<compile_context>
chip_gen: v6e
topology: v6e:2x2x1
jax: 0.10.0
libtpu: 0.0.40
codegen_flags: <defaults>
</compile_context>

<pallas_src>
import jax
import jax.numpy as jnp
from jax.experimental import pallas as pl
from jax.experimental.pallas import tpu as pltpu


# ------------------------------- Pallas kernel (head) -------------------------------
def _head_kernel(x_ref, w_ref, b_ref, o_ref, acc_ref):
    """One (Bt, tk) x (tk, C_pad) matmul step of the flattened linear head.

    Grid = (batch tiles, K tiles); K is the reduction axis (last, 'arbitrary').
    acc_ref is a (Bt, C_pad) f32 VMEM accumulator resident across the K axis.
    """
    k = pl.program_id(1)

    @pl.when(k == 0)
    def _init():
        acc_ref[...] = jnp.zeros_like(acc_ref)

    # bf16 inputs, f32 accumulation on the MXU.
    acc_ref[...] += jnp.dot(x_ref[...], w_ref[...],
                            preferred_element_type=jnp.float32)

    @pl.when(k == pl.num_programs(1) - 1)
    def _finalize():
        o_ref[...] = (acc_ref[...] + b_ref[...]).astype(o_ref.dtype)


def _round_up(x, m):
    return (x + m - 1) // m * m


# ------------------------------------ wrapper ------------------------------------
def linear_classifier_flattened(x_tokens, params):
    """Forward pass. x_tokens: (B, S) int32 -> logits (B, out_ftrs)."""
    B, S = x_tokens.shape
    tok_emb = params['tok_emb']          # (VOCAB, D)
    pos_emb = params['pos_emb']          # (MAX_SEQ_LEN, D)
    hw = params['head_w']                # (C, S*D)  PyTorch nn.Linear layout (out, in)
    hb = params['head_b']                # (C,)
    D = tok_emb.shape[1]
    C = hw.shape[0]
    K = S * D
    # The module's flatten + Linear(in_ftrs*max_seq_len, out_ftrs) requires S == max_seq_len.
    assert hw.shape[1] == K, "input sequence length must equal max_seq_len"

    # ---- embedding glue (gather + positional add); all dropout is identity in eval ----
    emb = tok_emb[x_tokens] + pos_emb[:S][None]            # (B, S, D) f32
    flat = emb.reshape(B, K).astype(jnp.bfloat16)          # flatten, feed kernel as bf16

    # ---- padding / tiling choices ----
    LANE, SUB = 128, 8
    C_pad = _round_up(max(C, LANE), LANE)                  # lane-dense output
    tk = min(1024, _round_up(K, LANE))                     # K tile (reduction axis)
    K_pad = _round_up(K, tk)
    Bt = min(128, _round_up(B, SUB))                       # sublane-aligned batch tile
    B_pad = _round_up(B, Bt)

    flat_p = jnp.pad(flat, ((0, B_pad - B), (0, K_pad - K)))                      # (B_pad, K_pad) bf16
    w_t = jnp.pad(hw.T.astype(jnp.bfloat16), ((0, K_pad - K), (0, C_pad - C)))    # (K_pad, C_pad) bf16
    b_p = jnp.pad(hb.astype(jnp.float32), (0, C_pad - C)).reshape(1, C_pad)       # (1, C_pad) f32

    grid = (B_pad // Bt, K_pad // tk)

    out = pl.pallas_call(
        _head_kernel,
        out_shape=jax.ShapeDtypeStruct((B_pad, C_pad), jnp.float32),
        grid_spec=pltpu.PrefetchScalarGridSpec(
            num_scalar_prefetch=0,
            grid=grid,
            in_specs=[
                pl.BlockSpec((Bt, tk), lambda i, k: (i, k)),        # flattened activations
                pl.BlockSpec((tk, C_pad), lambda i, k: (k, 0)),     # pre-transposed weight
                pl.BlockSpec((1, C_pad), lambda i, k: (0, 0)),      # bias (constant)
            ],
            out_specs=pl.BlockSpec((Bt, C_pad), lambda i, k: (i, 0)),
            scratch_shapes=[pltpu.VMEM((Bt, C_pad), jnp.float32)],
        ),
        compiler_params=pltpu.CompilerParams(
            dimension_semantics=("parallel", "arbitrary")),
    )(flat_p, w_t, b_p)

    return out[:B, :C]


# ------------------------- pure-JAX reference (for verification) -------------------------
def reference_forward(x_tokens, params):
    S = x_tokens.shape[1]
    emb = params['tok_emb'][x_tokens] + params['pos_emb'][:S][None]     # (B, S, D) f32
    flat = emb.reshape(emb.shape[0], -1)                                # (B, S*D)
    return jnp.dot(flat, params['head_w'].T,
                   precision=jax.lax.Precision.HIGHEST) + params['head_b']


# ------------------------------------- demo / test -------------------------------------
if __name__ == "__main__":
    VOCAB = 50          # vocabulary size
    N_CLASSES = 5       # > 2 -> out_ftrs = n_classes
    MAX_SEQ_LEN = 16
    B = 2
    S = MAX_SEQ_LEN     # flatten + Linear(in_ftrs*max_seq_len, ...) requires S == max_seq_len
    D = 32              # embedding.out_ftrs
    C = N_CLASSES

    key = jax.random.PRNGKey(0)
    ks = jax.random.split(key, 6)

    def nrm(k, shape, scale=0.05):
        return (jax.random.normal(k, shape) * scale).astype(jnp.float32)

    params = {
        'tok_emb': nrm(ks[0], (VOCAB, D), 0.1),
        'pos_emb': nrm(ks[1], (MAX_SEQ_LEN, D), 0.1),
        # head: Lambda(flatten) -> Dropout(0.2, eval=id) -> Linear(D*max_seq_len, out_ftrs)
        'head_w': nrm(ks[2], (C, MAX_SEQ_LEN * D)),
        'head_b': nrm(ks[3], (C,), 0.01),
    }

    x_tokens = jax.random.randint(ks[4], (B, S), 0, VOCAB, dtype=jnp.int32)

    out = jax.block_until_ready(linear_classifier_flattened(x_tokens, params))
    assert out.shape == (B, C), out.shape

    ref = jax.block_until_ready(reference_forward(x_tokens, params))
    # bf16 matmul (f32 accumulation) vs f32 HIGHEST reference -> relaxed tolerance.
    err = float(jnp.max(jnp.abs(out - ref)))
    assert jnp.allclose(out, ref, atol=2e-2, rtol=2e-2), err

    print("KERNEL_OK")
</pallas_src>

<mosaic_0001>
module attributes {stable_mosaic.version = 11 : i64} {
  func.func @_head_kernel(%arg0: i32, %arg1: i32, %arg2: memref<8x512xbf16, #tpu.memory_space<vmem>>, %arg3: memref<512x128xbf16, #tpu.memory_space<vmem>>, %arg4: memref<1x128xf32, #tpu.memory_space<vmem>>, %arg5: memref<8x128xf32, #tpu.memory_space<vmem>>, %arg6: memref<8x128xf32, #tpu.memory_space<vmem>>) attributes {dimension_semantics = [#tpu.dimension_semantics<parallel>, #tpu.dimension_semantics<arbitrary>], iteration_bounds = array<i64: 1, 1>, scalar_prefetch = 0 : i64, scratch_operands = 1 : i64, tpu.core_type = #tpu.core_type<tc>, window_params = [{transform_indices = @transform_0, window_bounds = array<i64: 8, 512>}, {transform_indices = @transform_1, window_bounds = array<i64: 512, 128>}, {pipeline_mode = #tpu.pipeline_mode<synchronous>, transform_indices = @transform_2, window_bounds = array<i64: 1, 128>}, {transform_indices = @transform_3, window_bounds = array<i64: 8, 128>}]} {
    %c0_i32 = arith.constant 0 : i32
    %0 = arith.cmpi eq, %arg1, %c0_i32 : i32
    %1 = arith.extui %0 : i1 to i32
    %c0_i32_0 = arith.constant 0 : i32
    %2 = arith.cmpi ne, %1, %c0_i32_0 : i32
    scf.if %2 {
      %cst_10 = arith.constant 0.000000e+00 : f32
      %12 = vector.broadcast %cst_10 : f32 to vector<8x128xf32>
      %c0_11 = arith.constant 0 : index
      %c0_12 = arith.constant 0 : index
      %13 = vector.load %arg6[%c0_11, %c0_12] : memref<8x128xf32, #tpu.memory_space<vmem>>, vector<8x128xf32>
      tpu.vector_store %arg6[%c0_11, %c0_12], %12 {strides = array<i32>} : memref<8x128xf32, #tpu.memory_space<vmem>>, vector<8x128xf32>,
    } else {
    }
    %c0 = arith.constant 0 : index
    %c0_1 = arith.constant 0 : index
    %3 = vector.load %arg6[%c0, %c0_1] : memref<8x128xf32, #tpu.memory_space<vmem>>, vector<8x128xf32>
    %c0_2 = arith.constant 0 : index
    %c0_3 = arith.constant 0 : index
    %4 = vector.load %arg2[%c0_2, %c0_3] : memref<8x512xbf16, #tpu.memory_space<vmem>>, vector<8x512xbf16>
    %c0_4 = arith.constant 0 : index
    %c0_5 = arith.constant 0 : index
    %5 = vector.load %arg3[%c0_4, %c0_5] : memref<512x128xbf16, #tpu.memory_space<vmem>>, vector<512x128xbf16>
    %cst = arith.constant dense<0.000000e+00> : vector<8x128xf32>
    %6 = tpu.matmul %4, %5, %cst {dimension_numbers = #tpu.dot_dimension_numbers<[1], [0], [0], [1], [0, 0, 1, 1], [], []>} : vector<8x512xbf16>, vector<512x128xbf16>, vector<8x128xf32> -> vector<8x128xf32>
    %7 = arith.addf %3, %6 : vector<8x128xf32>
    %c0_6 = arith.constant 0 : index
    %c0_7 = arith.constant 0 : index
    %8 = vector.load %arg6[%c0_6, %c0_7] : memref<8x128xf32, #tpu.memory_space<vmem>>, vector<8x128xf32>
    tpu.vector_store %arg6[%c0_6, %c0_7], %7 {strides = array<i32>} : memref<8x128xf32, #tpu.memory_space<vmem>>, vector<8x128xf32>,
    %c0_i32_8 = arith.constant 0 : i32
    %9 = arith.cmpi eq, %arg1, %c0_i32_8 : i32
    %10 = arith.extui %9 : i1 to i32
    %c0_i32_9 = arith.constant 0 : i32
    %11 = arith.cmpi ne, %10, %c0_i32_9 : i32
    scf.if %11 {
      %c0_10 = arith.constant 0 : index
      %c0_11 = arith.constant 0 : index
      %12 = vector.load %arg6[%c0_10, %c0_11] : memref<8x128xf32, #tpu.memory_space<vmem>>, vector<8x128xf32>
      %c0_12 = arith.constant 0 : index
      %c0_13 = arith.constant 0 : index
      %13 = vector.load %arg4[%c0_12, %c0_13] : memref<1x128xf32, #tpu.memory_space<vmem>>, vector<1x128xf32>
      %14 = vector.broadcast %13 : vector<1x128xf32> to vector<8x128xf32>
      %15 = arith.addf %12, %14 : vector<8x128xf32>
      %c0_14 = arith.constant 0 : index
      %c0_15 = arith.constant 0 : index
      %16 = vector.load %arg5[%c0_14, %c0_15] : memref<8x128xf32, #tpu.memory_space<vmem>>, vector<8x128xf32>
      tpu.vector_store %arg5[%c0_14, %c0_15], %15 {strides = array<i32>} : memref<8x128xf32, #tpu.memory_space<vmem>>, vector<8x128xf32>,
    } else {
    }
    return
  }
  func.func @transform_0(%arg0: i32, %arg1: i32) -> (i32, i32) {
    %c0_i32 = arith.constant 0 : i32
    return %arg0, %arg1 : i32, i32
  }
  func.func @transform_1(%arg0: i32, %arg1: i32) -> (i32, i32) {
    %c0_i32 = arith.constant 0 : i32
    %c0_i32_0 = arith.constant 0 : i32
    return %arg1, %c0_i32 : i32, i32
  }
  func.func @transform_2(%arg0: i32, %arg1: i32) -> (i32, i32) {
    %c0_i32 = arith.constant 0 : i32
    %c0_i32_0 = arith.constant 0 : i32
    %c0_i32_1 = arith.constant 0 : i32
    return %c0_i32, %c0_i32_0 : i32, i32
  }
  func.func @transform_3(%arg0: i32, %arg1: i32) -> (i32, i32) {
    %c0_i32 = arith.constant 0 : i32
    %c0_i32_0 = arith.constant 0 : i32
    return %arg0, %c0_i32 : i32, i32
  }
}

</mosaic_0001>

<llo_original>
// kernel: tpu_custom_call.1
$region0: #{tpu_custom_call.1}
  #allocation0 [shape = 'u32[]', space=smem, size = 0x4, offset = 0x4, fixed_abs, tag = 'smem constant byte address 0x4 - core index']
  #allocation1 [shape = 'u32[144,128]{1,0:T(1,128)}', space=vmem, size = 0x12000, scoped, tag = 'internal scratch']
  #allocation2 [shape = 'f32[8,128]{1,0:T(8,128)}', space=vmem, size = 0x1000, scoped, tag = 'scratch operand']
  %s0 = inlined_call_operand.hbm [shape: bf16[8,512], index: 0, kind: input, shape index: {}]
  %s1 = inlined_call_operand.hbm [shape: bf16[512,128], index: 1, kind: input, shape index: {}]
  %s2 = inlined_call_operand.vmem [shape: f32[1,128], index: 2, kind: input, shape index: {}]
  %s3 = inlined_call_operand.hbm [shape: f32[8,128], index: 3, kind: output, shape index: {}]
  %s4 = sld [smem:[#allocation0]]
  $region38: #{tpu_custom_call.1} parent=0
    _
  %s6 = ssub.s32 1, %s4
  %s7 = scalar_select 0, %s6, %s4
  $region1: #{tpu_custom_call.1} parent=0
    #allocation3 [shape = 'u8[8192]{0}', space=vmem, size = 0x2000, scoped, tag = 'input window, operand 0, single buffered']
    #allocation4 [shape = 's32[1]{0}', space=sflag, size = 0x4, scoped, tag = 'scoped memory for tpu_custom_call.1']
    #allocation5 [shape = 's32[1]{0}', space=sflag, size = 0x4, scoped, tag = 'scoped memory for tpu_custom_call.1']
    #allocation6 [shape = 'u8[131072]{0}', space=vmem, size = 0x20000, scoped, tag = 'input window, operand 1, single buffered']
    #allocation7 [shape = 's32[1]{0}', space=sflag, size = 0x4, scoped, tag = 'scoped memory for tpu_custom_call.1']
    #allocation8 [shape = 'u8[4096]{0}', space=vmem, size = 0x1000, scoped, tag = 'output window, operand 0, single buffered']
    %8 = vsyncpa [#allocation4], 0
    %9 = vsyncpa [#allocation7], 0
    %10 = vsyncpa [#allocation5], 0
    // Predicated region
    $region2: #{tpu_custom_call.1} parent=1 // pred_check
      _
    $region3: #{tpu_custom_call.1} parent=1 // pred_check_branch
      %12 = sbr.rel (0) target = $region5
    $region4: #{tpu_custom_call.1} parent=1 // pred_region
      %s14 = ssub.s32 256, 256
      %15 = vsyncadd [#allocation4], %s14
      %s17 = sshll.u32 [#allocation3], 4
      %s18 = int_to_ptr.vmem [resolvable:$true] %s17
      %20 = dma.hbm_to_vmem [thread:$0]  %s0, 256, %s18, [#allocation4]
    $region5: #{tpu_custom_call.1} parent=1 // pred_fallthru
      _
    // Predicated region
    $region6: #{tpu_custom_call.1} parent=1 // pred_check
      _
    $region7: #{tpu_custom_call.1} parent=1 // pred_check_branch
      %22 = sbr.rel (0) target = $region9
    $region8: #{tpu_custom_call.1} parent=1 // pred_region
      %s24 = ssub.s32 4096, 4096
      %25 = vsyncadd [#allocation7], %s24
      %s26 = sshll.u32 [#allocation6], 4
      %s27 = int_to_ptr.vmem [resolvable:$true] %s26
      %32 = dma.hbm_to_vmem [thread:$0]  %s1, 4096, %s27, [#allocation7], 64, 64, 4
    $region9: #{tpu_custom_call.1} parent=1 // pred_fallthru
      _
    // Predicated region
    $region10: #{tpu_custom_call.1} parent=1 // pred_check
      _
    $region11: #{tpu_custom_call.1} parent=1 // pred_check_branch
      %34 = sbr.rel (0) target = $region13
    $region12: #{tpu_custom_call.1} parent=1 // pred_region
      _
    $region13: #{tpu_custom_call.1} parent=1 // pred_fallthru
      _
    // Predicated region
    $region14: #{tpu_custom_call.1} parent=1 // pred_check
      _
    $region15: #{tpu_custom_call.1} parent=1 // pred_check_branch
      %36 = sbr.rel (0) target = $region17
    $region16: #{tpu_custom_call.1} parent=1 // pred_region
      %37 = dma.done [#allocation4], 256
    $region17: #{tpu_custom_call.1} parent=1 // pred_fallthru
      _
    // Predicated region
    $region18: #{tpu_custom_call.1} parent=1 // pred_check
      _
    $region19: #{tpu_custom_call.1} parent=1 // pred_check_branch
      %39 = sbr.rel (0) target = $region21
    $region20: #{tpu_custom_call.1} parent=1 // pred_region
      %40 = dma.done [#allocation7], 4096
    $region21: #{tpu_custom_call.1} parent=1 // pred_fallthru
      _
    %p42 = scmp.eq.s32.totalorder 0, 0
    // Predicated region
    $region22: #{tpu_custom_call.1} parent=1 // pred_check
      %p43 = pneg %p42
    $region23: #{tpu_custom_call.1} parent=1 // pred_check_branch
      %45 = sbr.rel (%p43) target = $region25
    $region24: #{tpu_custom_call.1} parent=1 // pred_region
      %46 = vst [vmem:[#allocation2] sm:$0xff] 0.0
    $region25: #{tpu_custom_call.1} parent=1 // pred_fallthru
      _
    %v47 = vld [vmem:[#allocation2] sm:$0xff]
    %v48 = vld [vmem:[#allocation3] sm:$0xff]
    %v49 = vld [vmem:[#allocation3 + $0x8] sm:$0xff]
    %v50 = vld [vmem:[#allocation6] sm:$0xf]
    %v51 = vld [vmem:[#allocation6 + $0x4] sm:$0xf]
    %v52 = vld [vmem:[#allocation6 + $0x8] sm:$0xf]
    %v53 = vld [vmem:[#allocation6 + $0xc] sm:$0xf]
    %v54 = vld [vmem:[#allocation6 + $0x10] sm:$0xf]
    %v55 = vld [vmem:[#allocation6 + $0x14] sm:$0xf]
    %v56 = vld [vmem:[#allocation6 + $0x18] sm:$0xf]
    %v57 = vld [vmem:[#allocation6 + $0x1c] sm:$0xf]
    %v58 = vld [vmem:[#allocation6 + $0x20] sm:$0xf]
    %v59 = vld [vmem:[#allocation6 + $0x24] sm:$0xf]
    %v60 = vld [vmem:[#allocation6 + $0x28] sm:$0xf]
    %v61 = vld [vmem:[#allocation6 + $0x2c] sm:$0xf]
    %v62 = vld [vmem:[#allocation6 + $0x30] sm:$0xf]
    %v63 = vld [vmem:[#allocation6 + $0x34] sm:$0xf]
    %v64 = vld [vmem:[#allocation6 + $0x38] sm:$0xf]
    %v65 = vld [vmem:[#allocation6 + $0x3c] sm:$0xf]
    %v66 = vld [vmem:[#allocation6 + $0x40] sm:$0xf]
    %v67 = vld [vmem:[#allocation6 + $0x44] sm:$0xf]
    %v68 = vld [vmem:[#allocation6 + $0x48] sm:$0xf]
    %v69 = vld [vmem:[#allocation6 + $0x4c] sm:$0xf]
    %v70 = vld [vmem:[#allocation6 + $0x50] sm:$0xf]
    %v71 = vld [vmem:[#allocation6 + $0x54] sm:$0xf]
    %v72 = vld [vmem:[#allocation6 + $0x58] sm:$0xf]
    %v73 = vld [vmem:[#allocation6 + $0x5c] sm:$0xf]
    %v74 = vld [vmem:[#allocation6 + $0x60] sm:$0xf]
    %v75 = vld [vmem:[#allocation6 + $0x64] sm:$0xf]
    %v76 = vld [vmem:[#allocation6 + $0x68] sm:$0xf]
    %v77 = vld [vmem:[#allocation6 + $0x6c] sm:$0xf]
    %v78 = vld [vmem:[#allocation6 + $0x70] sm:$0xf]
    %v79 = vld [vmem:[#allocation6 + $0x74] sm:$0xf]
    %v80 = vld [vmem:[#allocation6 + $0x78] sm:$0xf]
    %v81 = vld [vmem:[#allocation6 + $0x7c] sm:$0xf]
    %v82 = vld [vmem:[#allocation6 + $0x80] sm:$0xf]
    %v83 = vld [vmem:[#allocation6 + $0x84] sm:$0xf]
    %v84 = vld [vmem:[#allocation6 + $0x88] sm:$0xf]
    %v85 = vld [vmem:[#allocation6 + $0x8c] sm:$0xf]
    %v86 = vld [vmem:[#allocation6 + $0x90] sm:$0xf]
    %v87 = vld [vmem:[#allocation6 + $0x94] sm:$0xf]
    %v88 = vld [vmem:[#allocation6 + $0x98] sm:$0xf]
    %v89 = vld [vmem:[#allocation6 + $0x9c] sm:$0xf]
    %v90 = vld [vmem:[#allocation6 + $0xa0] sm:$0xf]
    %v91 = vld [vmem:[#allocation6 + $0xa4] sm:$0xf]
    %v92 = vld [vmem:[#allocation6 + $0xa8] sm:$0xf]
    %v93 = vld [vmem:[#allocation6 + $0xac] sm:$0xf]
    %v94 = vld [vmem:[#allocation6 + $0xb0] sm:$0xf]
    %v95 = vld [vmem:[#allocation6 + $0xb4] sm:$0xf]
    %v96 = vld [vmem:[#allocation6 + $0xb8] sm:$0xf]
    %v97 = vld [vmem:[#allocation6 + $0xbc] sm:$0xf]
    %v98 = vld [vmem:[#allocation6 + $0xc0] sm:$0xf]
    %v99 = vld [vmem:[#allocation6 + $0xc4] sm:$0xf]
    %v100 = vld [vmem:[#allocation6 + $0xc8] sm:$0xf]
    %v101 = vld [vmem:[#allocation6 + $0xcc] sm:$0xf]
    %v102 = vld [vmem:[#allocation6 + $0xd0] sm:$0xf]
    %v103 = vld [vmem:[#allocation6 + $0xd4] sm:$0xf]
    %v104 = vld [vmem:[#allocation6 + $0xd8] sm:$0xf]
    %v105 = vld [vmem:[#allocation6 + $0xdc] sm:$0xf]
    %v106 = vld [vmem:[#allocation6 + $0xe0] sm:$0xf]
    %v107 = vld [vmem:[#allocation6 + $0xe4] sm:$0xf]
    %v108 = vld [vmem:[#allocation6 + $0xe8] sm:$0xf]
    %v109 = vld [vmem:[#allocation6 + $0xec] sm:$0xf]
    %v110 = vld [vmem:[#allocation6 + $0xf0] sm:$0xf]
    %v111 = vld [vmem:[#allocation6 + $0xf4] sm:$0xf]
    %v112 = vld [vmem:[#allocation6 + $0xf8] sm:$0xf]
    %v113 = vld [vmem:[#allocation6 + $0xfc] sm:$0xf]
    %v116 = vunpack.c.l.b16 %v48
    %v117 = vunpack.c.h.b16 %v48
    %v118 = vunpack.c.l.b16 %v49
    %v119 = vunpack.c.h.b16 %v49
    %v120 = vpack.c.b16 %v116, %v116
    %v121 = vpack.c.b16 %v117, %v117
    %v122 = vpack.c.b16 %v118, %v118
    %v123 = vpack.c.b16 %v119, %v119
    %v192 = vunpack.c.l.b16 %v50
    %v193 = vunpack.c.l.b16 %v51
    %v194 = vunpack.c.l.b16 %v52
    %v195 = vunpack.c.l.b16 %v53
    %v196 = vunpack.c.l.b16 %v54
    %v197 = vunpack.c.l.b16 %v55
    %v198 = vunpack.c.l.b16 %v56
    %v199 = vunpack.c.l.b16 %v57
    %v200 = vunpack.c.l.b16 %v58
    %v201 = vunpack.c.l.b16 %v59
    %v202 = vunpack.c.l.b16 %v60
    %v203 = vunpack.c.l.b16 %v61
    %v204 = vunpack.c.l.b16 %v62
    %v205 = vunpack.c.l.b16 %v63
    %v206 = vunpack.c.l.b16 %v64
    %v207 = vunpack.c.l.b16 %v65
    %v208 = vunpack.c.l.b16 %v66
    %v209 = vunpack.c.l.b16 %v67
    %v210 = vunpack.c.l.b16 %v68
    %v211 = vunpack.c.l.b16 %v69
    %v212 = vunpack.c.l.b16 %v70
    %v213 = vunpack.c.l.b16 %v71
    %v214 = vunpack.c.l.b16 %v72
    %v215 = vunpack.c.l.b16 %v73
    %v216 = vunpack.c.l.b16 %v74
    %v217 = vunpack.c.l.b16 %v75
    %v218 = vunpack.c.l.b16 %v76
    %v219 = vunpack.c.l.b16 %v77
    %v220 = vunpack.c.l.b16 %v78
    %v221 = vunpack.c.l.b16 %v79
    %v222 = vunpack.c.l.b16 %v80
    %v223 = vunpack.c.l.b16 %v81
    %v224 = vunpack.c.l.b16 %v82
    %v225 = vunpack.c.l.b16 %v83
    %v226 = vunpack.c.l.b16 %v84
    %v227 = vunpack.c.l.b16 %v85
    %v228 = vunpack.c.l.b16 %v86
    %v229 = vunpack.c.l.b16 %v87
    %v230 = vunpack.c.l.b16 %v88
    %v231 = vunpack.c.l.b16 %v89
    %v232 = vunpack.c.l.b16 %v90
    %v233 = vunpack.c.l.b16 %v91
    %v234 = vunpack.c.l.b16 %v92
    %v235 = vunpack.c.l.b16 %v93
    %v236 = vunpack.c.l.b16 %v94
    %v237 = vunpack.c.l.b16 %v95
    %v238 = vunpack.c.l.b16 %v96
    %v239 = vunpack.c.l.b16 %v97
    %v240 = vunpack.c.l.b16 %v98
    %v241 = vunpack.c.l.b16 %v99
    %v242 = vunpack.c.l.b16 %v100
    %v243 = vunpack.c.l.b16 %v101
    %v244 = vunpack.c.l.b16 %v102
    %v245 = vunpack.c.l.b16 %v103
    %v246 = vunpack.c.l.b16 %v104
    %v247 = vunpack.c.l.b16 %v105
    %v248 = vunpack.c.l.b16 %v106
    %v249 = vunpack.c.l.b16 %v107
    %v250 = vunpack.c.l.b16 %v108
    %v251 = vunpack.c.l.b16 %v109
    %v252 = vunpack.c.l.b16 %v110
    %v253 = vunpack.c.l.b16 %v111
    %v254 = vunpack.c.l.b16 %v112
    %v255 = vunpack.c.l.b16 %v113
    %v256 = vpack.c.b16 %v193, %v192
    %v257 = vpack.c.b16 %v195, %v194
    %v258 = vpack.c.b16 %v197, %v196
    %v259 = vpack.c.b16 %v199, %v198
    %v260 = vpack.c.b16 %v201, %v200
    %v261 = vpack.c.b16 %v203, %v202
    %v262 = vpack.c.b16 %v205, %v204
    %v263 = vpack.c.b16 %v207, %v206
    %v264 = vpack.c.b16 %v209, %v208
    %v265 = vpack.c.b16 %v211, %v210
    %v266 = vpack.c.b16 %v213, %v212
    %v267 = vpack.c.b16 %v215, %v214
    %v268 = vpack.c.b16 %v217, %v216
    %v269 = vpack.c.b16 %v219, %v218
    %v270 = vpack.c.b16 %v221, %v220
    %v271 = vpack.c.b16 %v223, %v222
    %v272 = vpack.c.b16 %v225, %v224
    %v273 = vpack.c.b16 %v227, %v226
    %v274 = vpack.c.b16 %v229, %v228
    %v275 = vpack.c.b16 %v231, %v230
    %v276 = vpack.c.b16 %v233, %v232
    %v277 = vpack.c.b16 %v235, %v234
    %v278 = vpack.c.b16 %v237, %v236
    %v279 = vpack.c.b16 %v239, %v238
    %v280 = vpack.c.b16 %v241, %v240
    %v281 = vpack.c.b16 %v243, %v242
    %v282 = vpack.c.b16 %v245, %v244
    %v283 = vpack.c.b16 %v247, %v246
    %v284 = vpack.c.b16 %v249, %v248
    %v285 = vpack.c.b16 %v251, %v250
    %v286 = vpack.c.b16 %v253, %v252
    %v287 = vpack.c.b16 %v255, %v254
    %320 = vmatprep.subr.bf16.mxu0 0
    %321 = vmatpush1.bf16.msra.mxu0 %v263
    %322 = vmatprep.subr.bf16.mxu0 0
    %323 = vmatpush1.bf16.msra.mxu0 %v262
    %324 = vmatprep.subr.bf16.mxu0 0
    %325 = vmatpush1.bf16.msra.mxu0 %v261
    %326 = vmatprep.subr.bf16.mxu0 0
    %327 = vmatpush1.bf16.msra.mxu0 %v260
    %328 = vmatprep.subr.bf16.mxu0 0
    %329 = vmatpush1.bf16.msra.mxu0 %v259
    %330 = vmatprep.subr.bf16.mxu0 0
    %331 = vmatpush1.bf16.msra.mxu0 %v258
    %332 = vmatprep.subr.bf16.mxu0 0
    %333 = vmatpush1.bf16.msra.mxu0 %v257
    %334 = vmatprep.subr.bf16.mxu0 0
    %335 = vmatpush1.bf16.msra.mxu0 %v256
    %336 = vmatprep.subr.bf16.mxu0 0
    %337 = vmatpush2.bf16.msra.mxu0 %v271
    %338 = vmatprep.subr.bf16.mxu0 0
    %339 = vmatpush2.bf16.msra.mxu0 %v270
    %340 = vmatprep.subr.bf16.mxu0 0
    %341 = vmatpush2.bf16.msra.mxu0 %v269
    %342 = vmatprep.subr.bf16.mxu0 0
    %343 = vmatpush2.bf16.msra.mxu0 %v268
    %344 = vmatprep.subr.bf16.mxu0 0
    %345 = vmatpush2.bf16.msra.mxu0 %v267
    %346 = vmatprep.subr.bf16.mxu0 0
    %347 = vmatpush2.bf16.msra.mxu0 %v266
    %348 = vmatprep.subr.bf16.mxu0 0
    %349 = vmatpush2.bf16.msra.mxu0 %v265
    %350 = vmatprep.subr.bf16.mxu0 0
    %351 = vmatpush2.bf16.msra.mxu0 %v264
    %352 = vmatprep.mubr.bf16.mxu0 %v121
    %353 = vmatmul.mubr.bf16.gmra.mxu0 %v120
    %v354 = vpop.f32.mrf.mxu0
    %v355 = vadd.f32 0.0, %v354
    %v356 = vpop.f32.mrf.mxu0
    %v357 = vpop.f32.mrf.mxu0
    %v358 = vpop.f32.mrf.mxu0
    %359 = vdwg.mxu0
    %360 = vmatprep.subr.bf16.mxu0 0
    %361 = vmatpush1.bf16.msra.mxu0 %v279
    %362 = vmatprep.subr.bf16.mxu0 0
    %363 = vmatpush1.bf16.msra.mxu0 %v278
    %364 = vmatprep.subr.bf16.mxu0 0
    %365 = vmatpush1.bf16.msra.mxu0 %v277
    %366 = vmatprep.subr.bf16.mxu0 0
    %367 = vmatpush1.bf16.msra.mxu0 %v276
    %368 = vmatprep.subr.bf16.mxu0 0
    %369 = vmatpush1.bf16.msra.mxu0 %v275
    %370 = vmatprep.subr.bf16.mxu0 0
    %371 = vmatpush1.bf16.msra.mxu0 %v274
    %372 = vmatprep.subr.bf16.mxu0 0
    %373 = vmatpush1.bf16.msra.mxu0 %v273
    %374 = vmatprep.subr.bf16.mxu0 0
    %375 = vmatpush1.bf16.msra.mxu0 %v272
    %376 = vmatprep.subr.bf16.mxu0 0
    %377 = vmatpush2.bf16.msra.mxu0 %v287
    %378 = vmatprep.subr.bf16.mxu0 0
    %379 = vmatpush2.bf16.msra.mxu0 %v286
    %380 = vmatprep.subr.bf16.mxu0 0
    %381 = vmatpush2.bf16.msra.mxu0 %v285
    %382 = vmatprep.subr.bf16.mxu0 0
    %383 = vmatpush2.bf16.msra.mxu0 %v284
    %384 = vmatprep.subr.bf16.mxu0 0
    %385 = vmatpush2.bf16.msra.mxu0 %v283
    %386 = vmatprep.subr.bf16.mxu0 0
    %387 = vmatpush2.bf16.msra.mxu0 %v282
    %388 = vmatprep.subr.bf16.mxu0 0
    %389 = vmatpush2.bf16.msra.mxu0 %v281
    %390 = vmatprep.subr.bf16.mxu0 0
    %391 = vmatpush2.bf16.msra.mxu0 %v280
    %392 = vmatprep.mubr.bf16.mxu0 %v123
    %393 = vmatmul.mubr.bf16.gmra.mxu0 %v122
    %v394 = vpop.f32.mrf.mxu0
    %v395 = vadd.f32 %v355, %v394
    %v396 = vpop.f32.mrf.mxu0
    %v397 = vpop.f32.mrf.mxu0
    %v398 = vpop.f32.mrf.mxu0
    %399 = vdwg.mxu0
    %v400 = vadd.f32 %v47, %v395
    %401 = vst [vmem:[#allocation2] sm:$0xff] %v400
    // Predicated region
    $region26: #{tpu_custom_call.1} parent=1 // pred_check
      %p402 = pneg %p42
    $region27: #{tpu_custom_call.1} parent=1 // pred_check_branch
      %404 = sbr.rel (%p402) target = $region29
    $region28: #{tpu_custom_call.1} parent=1 // pred_region
      %v405 = vld [vmem:[#allocation2] sm:$0xff]
      %v406 = vld [vmem:[%s2] sm:$0x1]
      %v408 = vlaneseq
      %v409 = vshrl.u32 %v408, 7
      %v410 = vsub.s32 0, %v409
      %v411 = vrot.slane %v406, %v410
      %v413 = vadd.f32 %v405, %v411
      %414 = vst [vmem:[#allocation8] sm:$0xff] %v413
    $region29: #{tpu_custom_call.1} parent=1 // pred_fallthru
      _
    // Predicated region
    $region30: #{tpu_custom_call.1} parent=1 // pred_check
      _
    $region31: #{tpu_custom_call.1} parent=1 // pred_check_branch
      %416 = sbr.rel (0) target = $region33
    $region32: #{tpu_custom_call.1} parent=1 // pred_region
      %s418 = ssub.s32 128, 128
      %419 = vsyncadd [#allocation5], %s418
      %s421 = sshll.u32 [#allocation8], 4
      %s422 = int_to_ptr.vmem [resolvable:$true] %s421
      %424 = dma.vmem_to_hbm [thread:$0]  %s422, 128, %s3, [#allocation5]
    $region33: #{tpu_custom_call.1} parent=1 // pred_fallthru
      _
    // Predicated region
    $region34: #{tpu_custom_call.1} parent=1 // pred_check
      _
    $region35: #{tpu_custom_call.1} parent=1 // pred_check_branch
      %426 = sbr.rel (0) target = $region37
    $region36: #{tpu_custom_call.1} parent=1 // pred_region
      %427 = dma.done [#allocation5], 128
    $region37: #{tpu_custom_call.1} parent=1 // pred_fallthru
      _
    %428 = vsyncpa [#allocation4], 1
    %429 = vsyncpa [#allocation7], 1
    %430 = vsyncpa [#allocation5], 1

</llo_original>
